<compile_context>
chip_gen: v5e
topology: v5e:2x2
jax: 0.10.0
libtpu: 0.0.40
codegen_flags: <defaults>
</compile_context>

<pallas_src>
import functools

import jax
import jax.numpy as jnp
from jax.experimental import pallas as pl
from jax.experimental.pallas import tpu as pltpu

# Module "parameters" (constructor args of RTFM_loss) -- deterministic, in-script.
ALPHA = 0.0001
MARGIN = 100.0
NORMAL_WEIGHT = 1.0
ABNORMAL_WEIGHT = 1.0


def _rtfm_loss_kernel(sn_ref, sa_ref, nl_ref, al_ref, fn_ref, fa_ref,
                      out_ref, acc_ref, *, batch, margin, alpha,
                      normal_weight, abnormal_weight, needs_mask):
    b = pl.program_id(0)
    nb = pl.num_programs(0)
    tb = fn_ref.shape[0]

    @pl.when(b == 0)
    def _init():
        acc_ref[...] = jnp.zeros_like(acc_ref)

    # --- RTFM feature-magnitude term for this batch tile ---------------------
    # Feature tiles arrive in their native dtype (e.g. bf16); cast in-kernel.
    fn = fn_ref[...].astype(jnp.float32)          # (TB, T, D)
    fa = fa_ref[...].astype(jnp.float32)          # (TB, T, D)
    mean_n = jnp.mean(fn, axis=1)                 # (TB, D)  == torch.mean(feat, dim=1)
    mean_a = jnp.mean(fa, axis=1)                 # (TB, D)
    norm_n = jnp.sqrt(jnp.sum(mean_n * mean_n, axis=1, keepdims=True))    # (TB, 1)
    norm_a = jnp.sqrt(jnp.sum(mean_a * mean_a, axis=1, keepdims=True))    # (TB, 1)
    term = (jnp.abs(margin - norm_a) + norm_n) ** 2                       # (TB, 1)

    if needs_mask:
        # Mask padded rows of a ragged last tile (B % TB != 0).
        row = jax.lax.broadcasted_iota(jnp.int32, (tb, 1), 0) + b * tb
        term = jnp.where(row < batch, term, 0.0)
    acc_ref[...] += jnp.sum(term, axis=0, keepdims=True)

    # --- finalize: weighted BCE on scores + combine ---------------------------
    @pl.when(b == nb - 1)
    def _finalize():
        def bce(p, y):
            # torch.nn.BCELoss(weight) semantics; logs clamped at -100.
            w = abnormal_weight * y + normal_weight * (1.0 - y)
            log_p = jnp.maximum(jnp.log(p), -100.0)
            log_1mp = jnp.maximum(jnp.log1p(-p), -100.0)
            return -w * (y * log_p + (1.0 - y) * log_1mp)

        sn = sn_ref[...].astype(jnp.float32)      # (1, B)
        sa = sa_ref[...].astype(jnp.float32)      # (1, B)
        nl = nl_ref[...].astype(jnp.float32)      # (1, B)
        al = al_ref[...].astype(jnp.float32)      # (1, B)
        n_scores = sn.size + sa.size              # == 2B (static)
        loss_cls = (jnp.sum(bce(sn, nl)) + jnp.sum(bce(sa, al))) / n_scores
        loss_rtfm = acc_ref[0, 0] / batch
        out_ref[0, 0] = loss_cls + alpha * loss_rtfm


def rtfm_loss(score_normal, score_abnormal, nlabel, alabel, feat_n, feat_a,
              *, alpha=ALPHA, margin=MARGIN,
              normal_weight=NORMAL_WEIGHT, abnormal_weight=ABNORMAL_WEIGHT):
    B, T, D = feat_n.shape
    assert feat_a.shape == (B, T, D)

    # (B, 1) / (B,) -> (1, B): contiguous, metadata-only reshapes (no concat).
    sn = score_normal.reshape(1, B)
    sa = score_abnormal.reshape(1, B)
    nl = nlabel.reshape(1, B)
    al = alabel.reshape(1, B)

    # Batch-tile size: keep each feature tile <= ~2 MiB so the double-buffered
    # pipeline (2 feature inputs x 2 buffers) fits the default scoped VMEM on
    # every generation (16 MiB v5e, 32 MiB v6e/v7x, 64 MiB physical v7x).
    per_b_bytes = T * D * feat_n.dtype.itemsize
    tb = int(max(1, min(B, (2 * 1024 * 1024) // max(per_b_bytes, 1))))
    grid = (pl.cdiv(B, tb),)

    kernel = functools.partial(
        _rtfm_loss_kernel,
        batch=B, margin=float(margin), alpha=float(alpha),
        normal_weight=float(normal_weight), abnormal_weight=float(abnormal_weight),
        needs_mask=(B % tb != 0))

    small_spec = pl.BlockSpec((1, B), lambda b: (0, 0))          # resident in VMEM
    feat_spec = pl.BlockSpec((tb, T, D), lambda b: (b, 0, 0))    # streamed over B

    out = pl.pallas_call(
        kernel,
        out_shape=jax.ShapeDtypeStruct((1, 1), jnp.float32),
        grid=grid,
        in_specs=[small_spec, small_spec, small_spec, small_spec,
                  feat_spec, feat_spec],
        out_specs=pl.BlockSpec(memory_space=pltpu.MemorySpace.SMEM),
        scratch_shapes=[pltpu.VMEM((1, 1), jnp.float32)],
        compiler_params=pltpu.CompilerParams(
            dimension_semantics=("arbitrary",)),   # B axis reduces into one scalar
    )(sn, sa, nl, al, feat_n, feat_a)
    return out[0, 0]


if __name__ == "__main__":
    B, T, D = 2, 8, 32
    key = jax.random.PRNGKey(0)
    k1, k2, k3, k4 = jax.random.split(key, 4)

    # Scores are probabilities in (0,1) (the model applies sigmoid upstream).
    score_normal = jax.nn.sigmoid(jax.random.normal(k1, (B, 1), jnp.float32))
    score_abnormal = jax.nn.sigmoid(jax.random.normal(k2, (B, 1), jnp.float32))
    nlabel = jnp.zeros((B,), jnp.float32)
    alabel = jnp.ones((B,), jnp.float32)
    # Features stay in their native (bf16) dtype -- no host-side f32 upcast.
    feat_n = jax.random.normal(k3, (B, T, D), jnp.bfloat16)
    feat_a = jax.random.normal(k4, (B, T, D), jnp.bfloat16)

    loss = rtfm_loss(score_normal, score_abnormal, nlabel, alabel, feat_n, feat_a)
    jax.block_until_ready(loss)
    print("KERNEL_OK")
</pallas_src>

<mosaic_0001>
module attributes {stable_mosaic.version = 11 : i64} {
  func.func @_rtfm_loss_kernel(%arg0: i32, %arg1: memref<1x2xf32, #tpu.memory_space<vmem>>, %arg2: memref<1x2xf32, #tpu.memory_space<vmem>>, %arg3: memref<1x2xf32, #tpu.memory_space<vmem>>, %arg4: memref<1x2xf32, #tpu.memory_space<vmem>>, %arg5: memref<2x8x32xbf16, #tpu.memory_space<vmem>>, %arg6: memref<2x8x32xbf16, #tpu.memory_space<vmem>>, %arg7: memref<1x1xf32, #tpu.memory_space<smem>>, %arg8: memref<1x1xf32, #tpu.memory_space<vmem>>) attributes {dimension_semantics = [#tpu.dimension_semantics<arbitrary>], iteration_bounds = array<i64: 1>, scalar_prefetch = 0 : i64, scratch_operands = 1 : i64, tpu.core_type = #tpu.core_type<tc>, window_params = [{pipeline_mode = #tpu.pipeline_mode<synchronous>, transform_indices = @transform_0, window_bounds = array<i64: 1, 2>}, {pipeline_mode = #tpu.pipeline_mode<synchronous>, transform_indices = @transform_1, window_bounds = array<i64: 1, 2>}, {pipeline_mode = #tpu.pipeline_mode<synchronous>, transform_indices = @transform_2, window_bounds = array<i64: 1, 2>}, {pipeline_mode = #tpu.pipeline_mode<synchronous>, transform_indices = @transform_3, window_bounds = array<i64: 1, 2>}, {transform_indices = @transform_4, window_bounds = array<i64: 2, 8, 32>}, {transform_indices = @transform_5, window_bounds = array<i64: 2, 8, 32>}, {transform_indices = @transform_6, window_bounds = array<i64: 1, 1>}]} {
    %c0_i32 = arith.constant 0 : i32
    %0 = arith.cmpi eq, %arg0, %c0_i32 : i32
    %1 = arith.extui %0 : i1 to i32
    %c0_i32_0 = arith.constant 0 : i32
    %2 = arith.cmpi ne, %1, %c0_i32_0 : i32
    scf.if %2 {
      %cst_19 = arith.constant 0.000000e+00 : f32
      %34 = vector.broadcast %cst_19 : f32 to vector<1x1xf32>
      %c0_20 = arith.constant 0 : index
      %c0_21 = arith.constant 0 : index
      %35 = vector.load %arg8[%c0_20, %c0_21] : memref<1x1xf32, #tpu.memory_space<vmem>>, vector<1x1xf32>
      tpu.vector_store %arg8[%c0_20, %c0_21], %34 {strides = array<i32>} : memref<1x1xf32, #tpu.memory_space<vmem>>, vector<1x1xf32>,
    } else {
    }
    %c0 = arith.constant 0 : index
    %c0_1 = arith.constant 0 : index
    %c0_2 = arith.constant 0 : index
    %3 = vector.load %arg5[%c0, %c0_1, %c0_2] : memref<2x8x32xbf16, #tpu.memory_space<vmem>>, vector<2x8x32xbf16>
    %4 = arith.extf %3 : vector<2x8x32xbf16> to vector<2x8x32xf32>
    %c0_3 = arith.constant 0 : index
    %c0_4 = arith.constant 0 : index
    %c0_5 = arith.constant 0 : index
    %5 = vector.load %arg6[%c0_3, %c0_4, %c0_5] : memref<2x8x32xbf16, #tpu.memory_space<vmem>>, vector<2x8x32xbf16>
    %6 = arith.extf %5 : vector<2x8x32xbf16> to vector<2x8x32xf32>
    %cst = arith.constant dense<0.000000e+00> : vector<2x32xf32>
    %7 = vector.multi_reduction <add>, %4, %cst [1] : vector<2x8x32xf32> to vector<2x32xf32>
    %cst_6 = arith.constant 8.000000e+00 : f32
    %8 = vector.broadcast %cst_6 : f32 to vector<2x32xf32>
    %9 = arith.divf %7, %8 : vector<2x32xf32>
    %cst_7 = arith.constant dense<0.000000e+00> : vector<2x32xf32>
    %10 = vector.multi_reduction <add>, %6, %cst_7 [1] : vector<2x8x32xf32> to vector<2x32xf32>
    %cst_8 = arith.constant 8.000000e+00 : f32
    %11 = vector.broadcast %cst_8 : f32 to vector<2x32xf32>
    %12 = arith.divf %10, %11 : vector<2x32xf32>
    %13 = arith.mulf %9, %9 : vector<2x32xf32>
    %cst_9 = arith.constant dense<0.000000e+00> : vector<2xf32>
    %14 = vector.multi_reduction <add>, %13, %cst_9 [1] : vector<2x32xf32> to vector<2xf32>
    %15 = vector.shape_cast %14 : vector<2xf32> to vector<2x1xf32>
    %16 = math.sqrt %15 : vector<2x1xf32>
    %17 = arith.mulf %12, %12 : vector<2x32xf32>
    %cst_10 = arith.constant dense<0.000000e+00> : vector<2xf32>
    %18 = vector.multi_reduction <add>, %17, %cst_10 [1] : vector<2x32xf32> to vector<2xf32>
    %19 = vector.shape_cast %18 : vector<2xf32> to vector<2x1xf32>
    %20 = math.sqrt %19 : vector<2x1xf32>
    %cst_11 = arith.constant 1.000000e+02 : f32
    %21 = vector.broadcast %cst_11 : f32 to vector<2x1xf32>
    %22 = arith.subf %21, %20 : vector<2x1xf32>
    %23 = math.absf %22 : vector<2x1xf32>
    %24 = arith.addf %23, %16 : vector<2x1xf32>
    %25 = arith.mulf %24, %24 : vector<2x1xf32>
    %c0_12 = arith.constant 0 : index
    %c0_13 = arith.constant 0 : index
    %26 = vector.load %arg8[%c0_12, %c0_13] : memref<1x1xf32, #tpu.memory_space<vmem>>, vector<1x1xf32>
    %cst_14 = arith.constant dense<0.000000e+00> : vector<1xf32>
    %27 = vector.multi_reduction <add>, %25, %cst_14 [0] : vector<2x1xf32> to vector<1xf32>
    %28 = vector.shape_cast %27 : vector<1xf32> to vector<1x1xf32>
    %29 = arith.addf %26, %28 : vector<1x1xf32>
    %c0_15 = arith.constant 0 : index
    %c0_16 = arith.constant 0 : index
    %30 = vector.load %arg8[%c0_15, %c0_16] : memref<1x1xf32, #tpu.memory_space<vmem>>, vector<1x1xf32>
    tpu.vector_store %arg8[%c0_15, %c0_16], %29 {strides = array<i32>} : memref<1x1xf32, #tpu.memory_space<vmem>>, vector<1x1xf32>,
    %c0_i32_17 = arith.constant 0 : i32
    %31 = arith.cmpi eq, %arg0, %c0_i32_17 : i32
    %32 = arith.extui %31 : i1 to i32
    %c0_i32_18 = arith.constant 0 : i32
    %33 = arith.cmpi ne, %32, %c0_i32_18 : i32
    scf.if %33 {
      %c0_19 = arith.constant 0 : index
      %c0_20 = arith.constant 0 : index
      %34 = vector.load %arg1[%c0_19, %c0_20] : memref<1x2xf32, #tpu.memory_space<vmem>>, vector<1x2xf32>
      %c0_21 = arith.constant 0 : index
      %c0_22 = arith.constant 0 : index
      %35 = vector.load %arg2[%c0_21, %c0_22] : memref<1x2xf32, #tpu.memory_space<vmem>>, vector<1x2xf32>
      %c0_23 = arith.constant 0 : index
      %c0_24 = arith.constant 0 : index
      %36 = vector.load %arg3[%c0_23, %c0_24] : memref<1x2xf32, #tpu.memory_space<vmem>>, vector<1x2xf32>
      %c0_25 = arith.constant 0 : index
      %c0_26 = arith.constant 0 : index
      %37 = vector.load %arg4[%c0_25, %c0_26] : memref<1x2xf32, #tpu.memory_space<vmem>>, vector<1x2xf32>
      %cst_27 = arith.constant 1.000000e+00 : f32
      %38 = vector.broadcast %cst_27 : f32 to vector<1x2xf32>
      %39 = arith.mulf %38, %36 : vector<1x2xf32>
      %cst_28 = arith.constant 1.000000e+00 : f32
      %40 = vector.broadcast %cst_28 : f32 to vector<1x2xf32>
      %41 = arith.subf %40, %36 : vector<1x2xf32>
      %cst_29 = arith.constant 1.000000e+00 : f32
      %42 = vector.broadcast %cst_29 : f32 to vector<1x2xf32>
      %43 = arith.mulf %42, %41 : vector<1x2xf32>
      %44 = arith.addf %39, %43 : vector<1x2xf32>
      %45 = math.log %34 : vector<1x2xf32>
      %cst_30 = arith.constant -1.000000e+02 : f32
      %46 = vector.broadcast %cst_30 : f32 to vector<1x2xf32>
      %47 = arith.maximumf %45, %46 : vector<1x2xf32>
      %cst_31 = arith.constant 0.000000e+00 : f32
      %48 = vector.broadcast %cst_31 : f32 to vector<1x2xf32>
      %49 = arith.subf %48, %34 : vector<1x2xf32>
      %50 = math.log1p %49 : vector<1x2xf32>
      %cst_32 = arith.constant -1.000000e+02 : f32
      %51 = vector.broadcast %cst_32 : f32 to vector<1x2xf32>
      %52 = arith.maximumf %50, %51 : vector<1x2xf32>
      %cst_33 = arith.constant 0.000000e+00 : f32
      %53 = vector.broadcast %cst_33 : f32 to vector<1x2xf32>
      %54 = arith.subf %53, %44 : vector<1x2xf32>
      %55 = arith.mulf %36, %47 : vector<1x2xf32>
      %cst_34 = arith.constant 1.000000e+00 : f32
      %56 = vector.broadcast %cst_34 : f32 to vector<1x2xf32>
      %57 = arith.subf %56, %36 : vector<1x2xf32>
      %58 = arith.mulf %57, %52 : vector<1x2xf32>
      %59 = arith.addf %55, %58 : vector<1x2xf32>
      %60 = arith.mulf %54, %59 : vector<1x2xf32>
      %61 = vector.shape_cast %60 : vector<1x2xf32> to vector<1x1x2xf32>
      %cst_35 = arith.constant dense<0.000000e+00> : vector<1xf32>
      %62 = vector.multi_reduction <add>, %61, %cst_35 [1, 2] : vector<1x1x2xf32> to vector<1xf32>
      %63 = vector.shape_cast %62 : vector<1xf32> to vector<1x1x1xf32>
      %64 = vector.extract %63[0, 0, 0] : f32 from vector<1x1x1xf32>
      %cst_36 = arith.constant 1.000000e+00 : f32
      %65 = vector.broadcast %cst_36 : f32 to vector<1x2xf32>
      %66 = arith.mulf %65, %37 : vector<1x2xf32>
      %cst_37 = arith.constant 1.000000e+00 : f32
      %67 = vector.broadcast %cst_37 : f32 to vector<1x2xf32>
      %68 = arith.subf %67, %37 : vector<1x2xf32>
      %cst_38 = arith.constant 1.000000e+00 : f32
      %69 = vector.broadcast %cst_38 : f32 to vector<1x2xf32>
      %70 = arith.mulf %69, %68 : vector<1x2xf32>
      %71 = arith.addf %66, %70 : vector<1x2xf32>
      %72 = math.log %35 : vector<1x2xf32>
      %cst_39 = arith.constant -1.000000e+02 : f32
      %73 = vector.broadcast %cst_39 : f32 to vector<1x2xf32>
      %74 = arith.maximumf %72, %73 : vector<1x2xf32>
      %cst_40 = arith.constant 0.000000e+00 : f32
      %75 = vector.broadcast %cst_40 : f32 to vector<1x2xf32>
      %76 = arith.subf %75, %35 : vector<1x2xf32>
      %77 = math.log1p %76 : vector<1x2xf32>
      %cst_41 = arith.constant -1.000000e+02 : f32
      %78 = vector.broadcast %cst_41 : f32 to vector<1x2xf32>
      %79 = arith.maximumf %77, %78 : vector<1x2xf32>
      %cst_42 = arith.constant 0.000000e+00 : f32
      %80 = vector.broadcast %cst_42 : f32 to vector<1x2xf32>
      %81 = arith.subf %80, %71 : vector<1x2xf32>
      %82 = arith.mulf %37, %74 : vector<1x2xf32>
      %cst_43 = arith.constant 1.000000e+00 : f32
      %83 = vector.broadcast %cst_43 : f32 to vector<1x2xf32>
      %84 = arith.subf %83, %37 : vector<1x2xf32>
      %85 = arith.mulf %84, %79 : vector<1x2xf32>
      %86 = arith.addf %82, %85 : vector<1x2xf32>
      %87 = arith.mulf %81, %86 : vector<1x2xf32>
      %88 = vector.shape_cast %87 : vector<1x2xf32> to vector<1x1x2xf32>
      %cst_44 = arith.constant dense<0.000000e+00> : vector<1xf32>
      %89 = vector.multi_reduction <add>, %88, %cst_44 [1, 2] : vector<1x1x2xf32> to vector<1xf32>
      %90 = vector.shape_cast %89 : vector<1xf32> to vector<1x1x1xf32>
      %91 = vector.extract %90[0, 0, 0] : f32 from vector<1x1x1xf32>
      %92 = arith.addf %64, %91 : f32
      %cst_45 = arith.constant 4.000000e+00 : f32
      %93 = arith.divf %92, %cst_45 : f32
      %c0_46 = arith.constant 0 : index
      %c0_47 = arith.constant 0 : index
      %94 = vector.load %arg8[%c0_46, %c0_47] : memref<1x1xf32, #tpu.memory_space<vmem>>, vector<1x1xf32>
      %95 = vector.extract %94[0, 0] : f32 from vector<1x1xf32>
      %cst_48 = arith.constant 2.000000e+00 : f32
      %96 = arith.divf %95, %cst_48 : f32
      %cst_49 = arith.constant 9.99999974E-5 : f32
      %97 = arith.mulf %cst_49, %96 : f32
      %98 = arith.addf %93, %97 : f32
      %c0_50 = arith.constant 0 : index
      %c0_51 = arith.constant 0 : index
      %99 = memref.load %arg7[%c0_50, %c0_51] : memref<1x1xf32, #tpu.memory_space<smem>>
      memref.store %98, %arg7[%c0_50, %c0_51] : memref<1x1xf32, #tpu.memory_space<smem>>
    } else {
    }
    return
  }
  func.func @transform_0(%arg0: i32) -> (i32, i32) {
    %c0_i32 = arith.constant 0 : i32
    %c0_i32_0 = arith.constant 0 : i32
    %c0_i32_1 = arith.constant 0 : i32
    return %c0_i32, %c0_i32_0 : i32, i32
  }
  func.func @transform_1(%arg0: i32) -> (i32, i32) {
    %c0_i32 = arith.constant 0 : i32
    %c0_i32_0 = arith.constant 0 : i32
    %c0_i32_1 = arith.constant 0 : i32
    return %c0_i32, %c0_i32_0 : i32, i32
  }
  func.func @transform_2(%arg0: i32) -> (i32, i32) {
    %c0_i32 = arith.constant 0 : i32
    %c0_i32_0 = arith.constant 0 : i32
    %c0_i32_1 = arith.constant 0 : i32
    return %c0_i32, %c0_i32_0 : i32, i32
  }
  func.func @transform_3(%arg0: i32) -> (i32, i32) {
    %c0_i32 = arith.constant 0 : i32
    %c0_i32_0 = arith.constant 0 : i32
    %c0_i32_1 = arith.constant 0 : i32
    return %c0_i32, %c0_i32_0 : i32, i32
  }
  func.func @transform_4(%arg0: i32) -> (i32, i32, i32) {
    %c0_i32 = arith.constant 0 : i32
    %c0_i32_0 = arith.constant 0 : i32
    %c0_i32_1 = arith.constant 0 : i32
    return %arg0, %c0_i32, %c0_i32_0 : i32, i32, i32
  }
  func.func @transform_5(%arg0: i32) -> (i32, i32, i32) {
    %c0_i32 = arith.constant 0 : i32
    %c0_i32_0 = arith.constant 0 : i32
    %c0_i32_1 = arith.constant 0 : i32
    return %arg0, %c0_i32, %c0_i32_0 : i32, i32, i32
  }
  func.func @transform_6(%arg0: i32) -> (i32, i32) {
    %c0_i32 = arith.constant 0 : i32
    %c0_i32_0 = arith.constant 0 : i32
    %c0_i32_1 = arith.constant 0 : i32
    return %c0_i32, %c0_i32_0 : i32, i32
  }
}

</mosaic_0001>

<llo_original>
// kernel: tpu_custom_call.1
$region0: #{tpu_custom_call.1}
  #allocation0 [shape = 'u32[]', space=smem, size = 0x4, offset = 0x4, fixed_abs, tag = 'smem constant byte address 0x4 - core index']
  #allocation1 [shape = 'u32[72,128]{1,0:T(1,128)}', space=vmem, size = 0x9000, scoped, tag = 'internal scratch']
  #allocation2 [shape = 'f32[1,1]{1,0:T(1,128)}', space=vmem, size = 0x200, scoped, tag = 'scratch operand']
  %s0 = inlined_call_operand.hbm [shape: f32[1,2], index: 0, kind: input, shape index: {}]
  %s1 = inlined_call_operand.hbm [shape: f32[1,2], index: 1, kind: input, shape index: {}]
  %s2 = inlined_call_operand.vmem [shape: f32[1,2], index: 2, kind: input, shape index: {}]
  %s3 = inlined_call_operand.vmem [shape: f32[1,2], index: 3, kind: input, shape index: {}]
  %s4 = inlined_call_operand.hbm [shape: bf16[2,8,32], index: 4, kind: input, shape index: {}]
  %s5 = inlined_call_operand.hbm [shape: bf16[2,8,32], index: 5, kind: input, shape index: {}]
  %s6 = inlined_call_operand.hbm [shape: f32[1,1], index: 6, kind: output, shape index: {}]
  %s7 = sld [smem:[#allocation0]]
  $region58: #{tpu_custom_call.1} parent=0
    _
  %s9 = ssub.s32 1, %s7
  %s10 = scalar_select 0, %s9, %s7
  $region1: #{tpu_custom_call.1} parent=0
    #allocation3 [shape = 'u8[512]{0}', space=vmem, size = 0x400, scoped, tag = 'input window, operand 0, single buffered']
    #allocation4 [shape = 's32[1]{0}', space=sflag, size = 0x4, scoped, tag = 'scoped memory for tpu_custom_call.1']
    #allocation5 [shape = 's32[1]{0}', space=sflag, size = 0x4, scoped, tag = 'scoped memory for tpu_custom_call.1']
    #allocation6 [shape = 'u8[512]{0}', space=vmem, size = 0x400, scoped, tag = 'input window, operand 1, single buffered']
    #allocation7 [shape = 's32[1]{0}', space=sflag, size = 0x4, scoped, tag = 'scoped memory for tpu_custom_call.1']
    #allocation8 [shape = 'u8[4096]{0}', space=vmem, size = 0x1000, scoped, tag = 'input window, operand 4, single buffered']
    #allocation9 [shape = 'u8[4096]{0}', space=vmem, size = 0x1000, scoped, tag = 'input window, operand 5, single buffered']
    #allocation10 [shape = 's32[1]{0}', space=sflag, size = 0x4, scoped, tag = 'scoped memory for tpu_custom_call.1']
    #allocation11 [shape = 'u8[512]{0}', space=smem, size = 0x200, scoped, tag = 'output window, operand 0, single buffered']
    %11 = vsyncpa [#allocation4], 0
    %12 = vsyncpa [#allocation7], 0
    %13 = vsyncpa [#allocation10], 0
    %14 = vsyncpa [#allocation5], 0
    // Predicated region
    $region2: #{tpu_custom_call.1} parent=1 // pred_check
      _
    $region3: #{tpu_custom_call.1} parent=1 // pred_check_branch
      %16 = sbr.rel (0) target = $region5
    $region4: #{tpu_custom_call.1} parent=1 // pred_region
      %18 = vsyncadd [#allocation4], 0
      %s20 = sshll.u32 %s0, 4
      %s21 = int_to_ptr.hbm [resolvable:$true] %s20
      %s22 = sshll.u32 [#allocation3], 4
      %s23 = int_to_ptr.vmem [resolvable:$true] %s22
      %25 = dma.hbm_to_vmem [thread:$0]  %s21, 16, %s23, [#allocation4]
    $region5: #{tpu_custom_call.1} parent=1 // pred_fallthru
      _
    // Predicated region
    $region6: #{tpu_custom_call.1} parent=1 // pred_check
      _
    $region7: #{tpu_custom_call.1} parent=1 // pred_check_branch
      %27 = sbr.rel (0) target = $region9
    $region8: #{tpu_custom_call.1} parent=1 // pred_region
      %29 = vsyncadd [#allocation7], 0
      %s31 = sshll.u32 %s1, 4
      %s32 = int_to_ptr.hbm [resolvable:$true] %s31
      %s33 = sshll.u32 [#allocation6], 4
      %s34 = int_to_ptr.vmem [resolvable:$true] %s33
      %36 = dma.hbm_to_vmem [thread:$0]  %s32, 16, %s34, [#allocation7]
    $region9: #{tpu_custom_call.1} parent=1 // pred_fallthru
      _
    // Predicated region
    $region10: #{tpu_custom_call.1} parent=1 // pred_check
      _
    $region11: #{tpu_custom_call.1} parent=1 // pred_check_branch
      %38 = sbr.rel (0) target = $region13
    $region12: #{tpu_custom_call.1} parent=1 // pred_region
      _
    $region13: #{tpu_custom_call.1} parent=1 // pred_fallthru
      _
    // Predicated region
    $region14: #{tpu_custom_call.1} parent=1 // pred_check
      _
    $region15: #{tpu_custom_call.1} parent=1 // pred_check_branch
      %40 = sbr.rel (0) target = $region17
    $region16: #{tpu_custom_call.1} parent=1 // pred_region
      _
    $region17: #{tpu_custom_call.1} parent=1 // pred_fallthru
      _
    // Predicated region
    $region18: #{tpu_custom_call.1} parent=1 // pred_check
      _
    $region19: #{tpu_custom_call.1} parent=1 // pred_check_branch
      %42 = sbr.rel (0) target = $region21
    $region20: #{tpu_custom_call.1} parent=1 // pred_region
      %44 = vsyncadd [#allocation7], 0
      %s45 = sshll.u32 %s4, 4
      %s46 = int_to_ptr.hbm [resolvable:$true] %s45
      %s47 = sshll.u32 [#allocation8], 4
      %s48 = int_to_ptr.vmem [resolvable:$true] %s47
      %53 = dma.hbm_to_vmem [thread:$0]  %s46, 128, %s48, [#allocation7], 64, 64, 4
    $region21: #{tpu_custom_call.1} parent=1 // pred_fallthru
      _
    // Predicated region
    $region22: #{tpu_custom_call.1} parent=1 // pred_check
      _
    $region23: #{tpu_custom_call.1} parent=1 // pred_check_branch
      %55 = sbr.rel (0) target = $region25
    $region24: #{tpu_custom_call.1} parent=1 // pred_region
      %57 = vsyncadd [#allocation10], 0
      %s58 = sshll.u32 %s5, 4
      %s59 = int_to_ptr.hbm [resolvable:$true] %s58
      %s60 = sshll.u32 [#allocation9], 4
      %s61 = int_to_ptr.vmem [resolvable:$true] %s60
      %66 = dma.hbm_to_vmem [thread:$0]  %s59, 128, %s61, [#allocation10], 64, 64, 4
    $region25: #{tpu_custom_call.1} parent=1 // pred_fallthru
      _
    // Predicated region
    $region26: #{tpu_custom_call.1} parent=1 // pred_check
      _
    $region27: #{tpu_custom_call.1} parent=1 // pred_check_branch
      %68 = sbr.rel (0) target = $region29
    $region28: #{tpu_custom_call.1} parent=1 // pred_region
      %70 = dma.done [#allocation4], 16
    $region29: #{tpu_custom_call.1} parent=1 // pred_fallthru
      _
    // Predicated region
    $region30: #{tpu_custom_call.1} parent=1 // pred_check
      _
    $region31: #{tpu_custom_call.1} parent=1 // pred_check_branch
      %72 = sbr.rel (0) target = $region33
    $region32: #{tpu_custom_call.1} parent=1 // pred_region
      %74 = dma.done [#allocation7], 16
    $region33: #{tpu_custom_call.1} parent=1 // pred_fallthru
      _
    // Predicated region
    $region34: #{tpu_custom_call.1} parent=1 // pred_check
      _
    $region35: #{tpu_custom_call.1} parent=1 // pred_check_branch
      %76 = sbr.rel (0) target = $region37
    $region36: #{tpu_custom_call.1} parent=1 // pred_region
      %78 = dma.done [#allocation7], 128
    $region37: #{tpu_custom_call.1} parent=1 // pred_fallthru
      _
    // Predicated region
    $region38: #{tpu_custom_call.1} parent=1 // pred_check
      _
    $region39: #{tpu_custom_call.1} parent=1 // pred_check_branch
      %80 = sbr.rel (0) target = $region41
    $region40: #{tpu_custom_call.1} parent=1 // pred_region
      %82 = dma.done [#allocation10], 128
    $region41: #{tpu_custom_call.1} parent=1 // pred_fallthru
      _
    %p83 = scmp.eq.s32.totalorder 0, 0
    // Predicated region
    $region42: #{tpu_custom_call.1} parent=1 // pred_check
      %p84 = pneg %p83
    $region43: #{tpu_custom_call.1} parent=1 // pred_check_branch
      %86 = sbr.rel (%p84) target = $region45
    $region44: #{tpu_custom_call.1} parent=1 // pred_region
      %vm87 = vcmask 0
      %88 = vst.msk [vmem:[#allocation2] sm:$0x1] %vm87, 0.0
    $region45: #{tpu_custom_call.1} parent=1 // pred_fallthru
      _
    %v89 = vld [vmem:[#allocation8] sm:$0xf]
    %v90 = vld [vmem:[#allocation8 + $0x4] sm:$0xf]
    %v91 = vunpack.c.l.bf16 %v89
    %v92 = vunpack.c.l.bf16 %v90
    %v93 = vld [vmem:[#allocation9] sm:$0xf]
    %v94 = vld [vmem:[#allocation9 + $0x4] sm:$0xf]
    %v95 = vunpack.c.l.bf16 %v93
    %v96 = vunpack.c.l.bf16 %v94
    %vm97 = vcmask 261120
    %v98 = vsel %vm97, %v91, 0.0
    %v99 = vrot.slane %v98, 4
    %v100 = vadd.f32 %v98, %v99
    %v101 = vrot.slane %v100, 2
    %v102 = vadd.f32 %v100, %v101
    %v103 = vrot.slane %v102, 1
    %v104 = vadd.f32 %v102, %v103
    %v105 = vsel %vm97, %v92, 0.0
    %v106 = vrot.slane %v105, 4
    %v107 = vadd.f32 %v105, %v106
    %v108 = vrot.slane %v107, 2
    %v109 = vadd.f32 %v107, %v108
    %v110 = vrot.slane %v109, 1
    %v111 = vadd.f32 %v109, %v110
    %v112 = vrcp.pop 8.0
    %v113 = vmul.f32 8.0, %v112
    %v114 = vsub.f32 1.0, %v113
    %v115 = vmul.f32 %v112, %v114
    %v116 = vadd.f32 %v112, %v115
    %vm117 = vweird.f32 %v112
    %v118 = vsel %vm117, %v112, %v116
    %v119 = vmul.f32 %v104, %v118
    %v120 = vmul.f32 %v111, %v118
    %v121 = vsel %vm97, %v95, 0.0
    %v122 = vrot.slane %v121, 4
    %v123 = vadd.f32 %v121, %v122
    %v124 = vrot.slane %v123, 2
    %v125 = vadd.f32 %v123, %v124
    %v126 = vrot.slane %v125, 1
    %v127 = vadd.f32 %v125, %v126
    %v128 = vsel %vm97, %v96, 0.0
    %v129 = vrot.slane %v128, 4
    %v130 = vadd.f32 %v128, %v129
    %v131 = vrot.slane %v130, 2
    %v132 = vadd.f32 %v130, %v131
    %v133 = vrot.slane %v132, 1
    %v134 = vadd.f32 %v132, %v133
    %v135 = vmul.f32 %v127, %v118
    %v136 = vmul.f32 %v134, %v118
    %v137 = vmul.f32 %v119, %v119
    %v138 = vmul.f32 %v120, %v120
    %vm141 = vcmask 1041409
    %v142 = vsel %vm141, %v138, %v137
    %vm144 = vcmask 254976
    %v145 = vsel %vm144, %v142, 0.0
    %146 = vadd.xlane.f32.xlu0 %v145
    %v147 = vpop.xlane.xlu0 %146
    %v148 = vrsqrt.pop %v147
    %v149 = vmul.f32 %v148, %v147
    %v150 = vmul.f32 %v149, %v148
    %v151 = vmul.f32 0.5, %v150
    %v152 = vsub.f32 1.5, %v151
    %v153 = vmul.f32 %v148, %v152
    %v154 = vmul.f32 %v147, %v153
    %vm155 = vcmp.eq.f32.partialorder %v147, inf
    %v156 = vsel %vm155, %v147, %v154
    %vm157 = vcmp.eq.f32.partialorder %v147, 0.0
    %v158 = vand.u32 %v147, 2147483648
    %v159 = vsel %vm157, %v158, %v156
    %v160 = vmul.f32 %v135, %v135
    %v161 = vmul.f32 %v136, %v136
    %v164 = vsel %vm141, %v161, %v160
    %v166 = vsel %vm144, %v164, 0.0
    %167 = vadd.xlane.f32.xlu0 %v166
    %v168 = vpop.xlane.xlu0 %167
    %v169 = vrsqrt.pop %v168
    %v170 = vmul.f32 %v169, %v168
    %v171 = vmul.f32 %v170, %v169
    %v172 = vmul.f32 0.5, %v171
    %v173 = vsub.f32 1.5, %v172
    %v174 = vmul.f32 %v169, %v173
    %v175 = vmul.f32 %v168, %v174
    %vm176 = vcmp.eq.f32.partialorder %v168, inf
    %v177 = vsel %vm176, %v168, %v175
    %vm178 = vcmp.eq.f32.partialorder %v168, 0.0
    %v179 = vand.u32 %v168, 2147483648
    %v180 = vsel %vm178, %v179, %v177
    %v181 = vsub.f32 100.0, %v180
    %v182 = vand.u32 2147483647, %v181
    %v183 = vadd.f32 %v182, %v159
    %v184 = vmul.f32 %v183, %v183
    %v185 = vld [vmem:[#allocation2] sm:$0x1]
    %vm186 = vcmask 1041408
    %v187 = vsel %vm186, %v184, 0.0
    %v188 = vrot.slane %v187, 4
    %v189 = vadd.f32 %v187, %v188
    %v190 = vrot.slane %v189, 2
    %v191 = vadd.f32 %v189, %v190
    %v192 = vrot.slane %v191, 1
    %v193 = vadd.f32 %v191, %v192
    %v194 = vadd.f32 %v185, %v193
    %vm195 = vcmask 0
    %196 = vst.msk [vmem:[#allocation2] sm:$0x1] %vm195, %v194
    // Predicated region
    $region46: #{tpu_custom_call.1} parent=1 // pred_check
      %p197 = pneg %p83
    $region47: #{tpu_custom_call.1} parent=1 // pred_check_branch
      %199 = sbr.rel (%p197) target = $region49
    $region48: #{tpu_custom_call.1} parent=1 // pred_region
      %v200 = vld [vmem:[#allocation3] sm:$0x1]
      %v201 = vld [vmem:[#allocation6] sm:$0x1]
      %v202 = vld [vmem:[%s2] sm:$0x1]
      %v203 = vld [vmem:[%s3] sm:$0x1]
      %v204 = vsub.f32 1.0, %v202
      %v205 = vadd.f32 %v202, %v204
      %v206 = vlog2.pop %v200
      %v207 = vmul.f32 %v206, 0.6931472
      %v208 = vmax.f32 %v207, -100.0
      %v209 = vsub.f32 0.0, %v200
      %v210 = vadd.f32 %v209, 1.0
      %v211 = vlog2.pop %v210
      %v212 = vmul.f32 %v211, 0.6931472
      %v213 = vmul.f32 -0.5, %v209
      %v214 = vadd.f32 %v213, 1.0
      %v215 = vmul.f32 %v214, %v209
      %v216 = vand.u32 2147483647, %v209
      %vm217 = vcmp.lt.f32.partialorder %v216, 0.0004427343
      %v218 = vsel %vm217, %v215, %v212
      %v219 = vmax.f32 %v218, -100.0
      %v220 = vsub.f32 0.0, %v205
      %v221 = vmul.f32 %v202, %v208
      %v222 = vmul.f32 %v204, %v219
      %v223 = vadd.f32 %v221, %v222
      %v224 = vmul.f32 %v220, %v223
      %vm225 = vcmask 8192
      %v226 = vsel %vm225, %v224, 0.0
      %227 = vadd.xlane.f32.xlu0 %v226
      %v228 = vpop.xlane.xlu0 %227
      %v229 = vrot.slane %v228, 4
      %v230 = vadd.f32 %v228, %v229
      %v231 = vrot.slane %v230, 2
      %v232 = vadd.f32 %v230, %v231
      %v233 = vrot.slane %v232, 1
      %v234 = vadd.f32 %v232, %v233
      %s235 = vtos %v234
      %v236 = vsub.f32 1.0, %v203
      %v237 = vadd.f32 %v203, %v236
      %v238 = vlog2.pop %v201
      %v239 = vmul.f32 %v238, 0.6931472
      %v240 = vmax.f32 %v239, -100.0
      %v241 = vsub.f32 0.0, %v201
      %v242 = vadd.f32 %v241, 1.0
      %v243 = vlog2.pop %v242
      %v244 = vmul.f32 %v243, 0.6931472
      %v245 = vmul.f32 -0.5, %v241
      %v246 = vadd.f32 %v245, 1.0
      %v247 = vmul.f32 %v246, %v241
      %v248 = vand.u32 2147483647, %v241
      %vm249 = vcmp.lt.f32.partialorder %v248, 0.0004427343
      %v250 = vsel %vm249, %v247, %v244
      %v251 = vmax.f32 %v250, -100.0
      %v252 = vsub.f32 0.0, %v237
      %v253 = vmul.f32 %v203, %v240
      %v254 = vmul.f32 %v236, %v251
      %v255 = vadd.f32 %v253, %v254
      %v256 = vmul.f32 %v252, %v255
      %v257 = vsel %vm225, %v256, 0.0
      %258 = vadd.xlane.f32.xlu0 %v257
      %v259 = vpop.xlane.xlu0 %258
      %v260 = vrot.slane %v259, 4
      %v261 = vadd.f32 %v259, %v260
      %v262 = vrot.slane %v261, 2
      %v263 = vadd.f32 %v261, %v262
      %v264 = vrot.slane %v263, 1
      %v265 = vadd.f32 %v263, %v264
      %s266 = vtos %v265
      %s267 = sadd.f32 %s235, %s266
      %v268 = vrcp.pop 4.0
      %v269 = vmul.f32 4.0, %v268
      %v270 = vsub.f32 1.0, %v269
      %v271 = vmul.f32 %v268, %v270
      %v272 = vadd.f32 %v268, %v271
      %vm273 = vweird.f32 %v268
      %v274 = vsel %vm273, %v268, %v272
      %s275 = vtos %v274
      %s276 = smul.f32 %s267, %s275
      %v277 = vld [vmem:[#allocation2] sm:$0x1]
      %s278 = vtos %v277
      %v279 = vrcp.pop 2.0
      %v280 = vmul.f32 2.0, %v279
      %v281 = vsub.f32 1.0, %v280
      %v282 = vmul.f32 %v279, %v281
      %v283 = vadd.f32 %v279, %v282
      %vm284 = vweird.f32 %v279
      %v285 = vsel %vm284, %v279, %v283
      %s286 = vtos %v285
      %s287 = smul.f32 %s278, %s286
      %s288 = smul.f32 %s287, 0.0001
      %s289 = sadd.f32 %s276, %s288
      %s290 = scalar_lea.smem [#allocation11], 0
      %291 = sst [smem:[%s290]] %s289
    $region49: #{tpu_custom_call.1} parent=1 // pred_fallthru
      _
    // Predicated region
    $region50: #{tpu_custom_call.1} parent=1 // pred_check
      _
    $region51: #{tpu_custom_call.1} parent=1 // pred_check_branch
      %293 = sbr.rel (0) target = $region53
    $region52: #{tpu_custom_call.1} parent=1 // pred_region
      %295 = vsyncadd [#allocation5], 0
      %s297 = sshll.u32 %s6, 4
      %s298 = int_to_ptr.hbm [resolvable:$true] %s297
      %300 = dma.smem_to_hbm [#allocation11], 16, %s298, [#allocation5]
    $region53: #{tpu_custom_call.1} parent=1 // pred_fallthru
      _
    // Predicated region
    $region54: #{tpu_custom_call.1} parent=1 // pred_check
      _
    $region55: #{tpu_custom_call.1} parent=1 // pred_check_branch
      %302 = sbr.rel (0) target = $region57
    $region56: #{tpu_custom_call.1} parent=1 // pred_region
      %304 = dma.done [#allocation5], 16
    $region57: #{tpu_custom_call.1} parent=1 // pred_fallthru
      _
    %305 = sfence
    %306 = vsyncpa [#allocation4], 1
    %307 = vsyncpa [#allocation7], 1
    %308 = vsyncpa [#allocation10], 1
    %309 = vsyncpa [#allocation5], 1

</llo_original>
